<compile_context>
chip_gen: v7x
topology: tpu7x:2x2x1
jax: 0.10.0
libtpu: 0.0.40
codegen_flags: <defaults>
</compile_context>

<pallas_src>
import jax
import jax.numpy as jnp
from jax.experimental import pallas as pl
from jax.experimental.pallas import tpu as pltpu

# Problem sizes (lane-friendly feature dims; small classifier head).
BATCH = 256
D_IN = 128
HIDDEN = 128
N_CLASSES = 8


def piped_kernel(x_ref, w1_ref, b1_ref, w2_ref, b2_ref, o_ref):
    # model1: Linear (bf16 MXU, fp32 accumulate) + bias + ReLU (fp32 VPU).
    # Cast x in-kernel: avoids a separate wrapper cast op / extra HBM pass.
    x_bf = x_ref[...].astype(jnp.bfloat16)
    h = jnp.dot(x_bf, w1_ref[...], preferred_element_type=jnp.float32)
    h = jnp.maximum(h + b1_ref[...], 0.0)
    # model2: Linear classifier head. Only the real C columns are produced and
    # stored (masked vst is far cheaper than a 16x-padded fp32 slab writeback).
    y = jnp.dot(h.astype(w2_ref.dtype), w2_ref[...],
                preferred_element_type=jnp.float32)
    o_ref[...] = (y + b2_ref[...]).astype(o_ref.dtype)


def prepare_piped_params(w1, b1, w2, b2):
    """One-time parameter prep (do NOT call per forward step).

    Weights stored pre-transposed ([in, out]) so the kernel does plain
    jnp.dot — semantics identical to nn.Linear's x @ W^T + b.
    """
    w1_bf = w1.astype(jnp.bfloat16)                       # (D, H)
    w2_bf = w2.astype(jnp.bfloat16)                       # (H, C)
    b1_2d = b1.reshape(1, -1).astype(jnp.float32)         # (1, H)
    b2_2d = b2.reshape(1, -1).astype(jnp.float32)         # (1, C)
    return w1_bf, b1_2d, w2_bf, b2_2d


def _cores_per_chip():
    """Best-effort TensorCore count per chip (v7x has 2; v5e/v6e have 1)."""
    try:
        dev = jax.devices()[0]
        kind = str(getattr(dev, "device_kind", "")).lower()
        if "v7" in kind or "7x" in kind:
            return 2
        nc = getattr(dev, "num_cores", None)
        if isinstance(nc, int) and nc > 0:
            return nc
    except Exception:
        pass
    return 1


def _choose_tile_b(batch, n_cores):
    """Single grid step on single-TC chips; split batch across TCs otherwise."""
    if n_cores <= 1:
        return batch                      # one big tile: no per-step overhead
    per_core = pl.cdiv(batch, n_cores)
    per_core = max(8, ((per_core + 7) // 8) * 8)   # keep sublane-aligned
    return min(per_core, batch)


def piped_classifier_forward(x, params, *, tile_b=None):
    """x: (B, D) fp32; params from prepare_piped_params()."""
    w1_bf, b1_2d, w2_bf, b2_2d = params
    B, D = x.shape
    H = w1_bf.shape[1]
    C = w2_bf.shape[1]

    if tile_b is None:
        tile_b = _choose_tile_b(B, _cores_per_chip())

    # No physical batch padding: ragged final block is handled by Pallas.
    grid = (pl.cdiv(B, tile_b),)

    bytes_accessed = (B * D * 4            # x read (fp32)
                      + D * H * 2 + H * 4  # W1 (bf16) + b1 (fp32)
                      + H * C * 2 + C * 4  # W2 (bf16) + b2 (fp32)
                      + B * C * 4)         # output (fp32, real C columns)

    # TODO(synk): if HIDDEN/D_IN grow beyond the VMEM budget (esp. v7x 64 MiB),
    # tile the K/H axis with an fp32 acc scratch + pl.when init instead of
    # keeping W1/W2 fully resident.
    out = pl.pallas_call(
        piped_kernel,
        out_shape=jax.ShapeDtypeStruct((B, C), jnp.float32),
        grid=grid,
        in_specs=[
            pl.BlockSpec((tile_b, D), lambda i: (i, 0)),   # stream x tiles
            pl.BlockSpec((D, H), lambda i: (0, 0)),        # W1 resident
            pl.BlockSpec((1, H), lambda i: (0, 0)),        # b1 resident
            pl.BlockSpec((H, C), lambda i: (0, 0)),        # W2 resident
            pl.BlockSpec((1, C), lambda i: (0, 0)),        # b2 resident
        ],
        out_specs=pl.BlockSpec((tile_b, C), lambda i: (i, 0)),
        compiler_params=pltpu.CompilerParams(
            dimension_semantics=("parallel",),   # v7x: shard batch over 2 TCs
            vmem_limit_bytes=32 * 1024 * 1024,
        ),
        cost_estimate=pl.CostEstimate(
            flops=2 * B * (D * H + H * C),
            transcendentals=0,
            bytes_accessed=bytes_accessed,
        ),
    )(x, w1_bf, b1_2d, w2_bf, b2_2d)

    return out


def reference_forward(x, w1, b1, w2, b2):
    # Same bf16-MXU / fp32-accumulate numerics as the kernel.
    h = jnp.dot(x.astype(jnp.bfloat16), w1.astype(jnp.bfloat16),
                preferred_element_type=jnp.float32) + b1
    h = jnp.maximum(h, 0.0)
    y = jnp.dot(h.astype(jnp.bfloat16), w2.astype(jnp.bfloat16),
                preferred_element_type=jnp.float32) + b2
    return y


if __name__ == "__main__":
    key = jax.random.PRNGKey(0)
    kx, k1, kb1, k2, kb2 = jax.random.split(key, 5)

    # Deterministic synthetic parameters (the module __init__ only wires the
    # pipe; the concrete sub-model weights are initialized in-script).
    x = jax.random.normal(kx, (BATCH, D_IN), dtype=jnp.float32)
    w1 = jax.random.normal(k1, (D_IN, HIDDEN), dtype=jnp.float32) * 0.1
    b1 = jax.random.normal(kb1, (HIDDEN,), dtype=jnp.float32) * 0.1
    w2 = jax.random.normal(k2, (HIDDEN, N_CLASSES), dtype=jnp.float32) * 0.1
    b2 = jax.random.normal(kb2, (N_CLASSES,), dtype=jnp.float32) * 0.1

    # One-time parameter setup (hoisted out of the forward path).
    params = prepare_piped_params(w1, b1, w2, b2)
    params = jax.block_until_ready(params)

    out = piped_classifier_forward(x, params)
    out = jax.block_until_ready(out)

    ref = reference_forward(x, w1, b1, w2, b2)
    assert out.shape == (BATCH, N_CLASSES)
    assert jnp.allclose(out, ref, atol=1e-2, rtol=1e-2), (
        float(jnp.max(jnp.abs(out - ref))))

    print("KERNEL_OK")
</pallas_src>

<mosaic_0001>
module attributes {stable_mosaic.version = 11 : i64} {
  func.func @piped_kernel(%arg0: i32, %arg1: memref<256x128xf32, #tpu.memory_space<vmem>>, %arg2: memref<128x128xbf16, #tpu.memory_space<vmem>>, %arg3: memref<1x128xf32, #tpu.memory_space<vmem>>, %arg4: memref<128x8xbf16, #tpu.memory_space<vmem>>, %arg5: memref<1x8xf32, #tpu.memory_space<vmem>>, %arg6: memref<256x8xf32, #tpu.memory_space<vmem>>) attributes {dimension_semantics = [#tpu.dimension_semantics<parallel>], iteration_bounds = array<i64: 1>, scalar_prefetch = 0 : i64, scratch_operands = 0 : i64, tpu.core_type = #tpu.core_type<tc>, window_params = [{transform_indices = @transform_0, window_bounds = array<i64: 256, 128>}, {pipeline_mode = #tpu.pipeline_mode<synchronous>, transform_indices = @transform_1, window_bounds = array<i64: 128, 128>}, {pipeline_mode = #tpu.pipeline_mode<synchronous>, transform_indices = @transform_2, window_bounds = array<i64: 1, 128>}, {pipeline_mode = #tpu.pipeline_mode<synchronous>, transform_indices = @transform_3, window_bounds = array<i64: 128, 8>}, {pipeline_mode = #tpu.pipeline_mode<synchronous>, transform_indices = @transform_4, window_bounds = array<i64: 1, 8>}, {transform_indices = @transform_5, window_bounds = array<i64: 256, 8>}]} {
    %c0 = arith.constant 0 : index
    %c0_0 = arith.constant 0 : index
    %0 = vector.load %arg1[%c0, %c0_0] : memref<256x128xf32, #tpu.memory_space<vmem>>, vector<256x128xf32>
    %1 = arith.truncf %0 : vector<256x128xf32> to vector<256x128xbf16>
    %c0_1 = arith.constant 0 : index
    %c0_2 = arith.constant 0 : index
    %2 = vector.load %arg2[%c0_1, %c0_2] : memref<128x128xbf16, #tpu.memory_space<vmem>>, vector<128x128xbf16>
    %cst = arith.constant dense<0.000000e+00> : vector<256x128xf32>
    %3 = tpu.matmul %1, %2, %cst {dimension_numbers = #tpu.dot_dimension_numbers<[1], [0], [0], [1], [0, 0, 1, 1], [], []>} : vector<256x128xbf16>, vector<128x128xbf16>, vector<256x128xf32> -> vector<256x128xf32>
    %c0_3 = arith.constant 0 : index
    %c0_4 = arith.constant 0 : index
    %4 = vector.load %arg3[%c0_3, %c0_4] : memref<1x128xf32, #tpu.memory_space<vmem>>, vector<1x128xf32>
    %5 = vector.broadcast %4 : vector<1x128xf32> to vector<256x128xf32>
    %6 = arith.addf %3, %5 : vector<256x128xf32>
    %cst_5 = arith.constant 0.000000e+00 : f32
    %7 = vector.broadcast %cst_5 : f32 to vector<256x128xf32>
    %8 = arith.maximumf %6, %7 : vector<256x128xf32>
    %9 = arith.truncf %8 : vector<256x128xf32> to vector<256x128xbf16>
    %c0_6 = arith.constant 0 : index
    %c0_7 = arith.constant 0 : index
    %10 = vector.load %arg4[%c0_6, %c0_7] : memref<128x8xbf16, #tpu.memory_space<vmem>>, vector<128x8xbf16>
    %cst_8 = arith.constant dense<0.000000e+00> : vector<256x8xf32>
    %11 = tpu.matmul %9, %10, %cst_8 {dimension_numbers = #tpu.dot_dimension_numbers<[1], [0], [0], [1], [0, 0, 1, 1], [], []>} : vector<256x128xbf16>, vector<128x8xbf16>, vector<256x8xf32> -> vector<256x8xf32>
    %c0_9 = arith.constant 0 : index
    %c0_10 = arith.constant 0 : index
    %12 = vector.load %arg5[%c0_9, %c0_10] : memref<1x8xf32, #tpu.memory_space<vmem>>, vector<1x8xf32>
    %13 = vector.broadcast %12 : vector<1x8xf32> to vector<256x8xf32>
    %14 = arith.addf %11, %13 : vector<256x8xf32>
    %c0_11 = arith.constant 0 : index
    %c0_12 = arith.constant 0 : index
    %15 = vector.load %arg6[%c0_11, %c0_12] : memref<256x8xf32, #tpu.memory_space<vmem>>, vector<256x8xf32>
    tpu.vector_store %arg6[%c0_11, %c0_12], %14 {strides = array<i32>} : memref<256x8xf32, #tpu.memory_space<vmem>>, vector<256x8xf32>,
    return
  }
  func.func @transform_0(%arg0: i32) -> (i32, i32) {
    %c0_i32 = arith.constant 0 : i32
    %c0_i32_0 = arith.constant 0 : i32
    return %arg0, %c0_i32 : i32, i32
  }
  func.func @transform_1(%arg0: i32) -> (i32, i32) {
    %c0_i32 = arith.constant 0 : i32
    %c0_i32_0 = arith.constant 0 : i32
    %c0_i32_1 = arith.constant 0 : i32
    return %c0_i32, %c0_i32_0 : i32, i32
  }
  func.func @transform_2(%arg0: i32) -> (i32, i32) {
    %c0_i32 = arith.constant 0 : i32
    %c0_i32_0 = arith.constant 0 : i32
    %c0_i32_1 = arith.constant 0 : i32
    return %c0_i32, %c0_i32_0 : i32, i32
  }
  func.func @transform_3(%arg0: i32) -> (i32, i32) {
    %c0_i32 = arith.constant 0 : i32
    %c0_i32_0 = arith.constant 0 : i32
    %c0_i32_1 = arith.constant 0 : i32
    return %c0_i32, %c0_i32_0 : i32, i32
  }
  func.func @transform_4(%arg0: i32) -> (i32, i32) {
    %c0_i32 = arith.constant 0 : i32
    %c0_i32_0 = arith.constant 0 : i32
    %c0_i32_1 = arith.constant 0 : i32
    return %c0_i32, %c0_i32_0 : i32, i32
  }
  func.func @transform_5(%arg0: i32) -> (i32, i32) {
    %c0_i32 = arith.constant 0 : i32
    %c0_i32_0 = arith.constant 0 : i32
    return %arg0, %c0_i32 : i32, i32
  }
}

</mosaic_0001>

<llo_original>
// kernel: tpu_custom_call.1
$region0: #{tpu_custom_call.1}
  #allocation0 [shape = 'u32[]', space=smem, size = 0x4, offset = 0x4, fixed_abs, tag = 'smem constant byte address 0x4 - core index']
  #allocation1 [shape = 'u32[144,128]{1,0:T(1,128)}', space=vmem, size = 0x12000, scoped, tag = 'internal scratch']
  %s0 = inlined_call_operand.hbm [shape: f32[256,128], index: 0, kind: input, shape index: {}]
  %s1 = inlined_call_operand.vmem [shape: bf16[128,128], index: 1, kind: input, shape index: {}]
  %s2 = inlined_call_operand.vmem [shape: f32[1,128], index: 2, kind: input, shape index: {}]
  %s3 = inlined_call_operand.vmem [shape: bf16[128,8], index: 3, kind: input, shape index: {}]
  %s4 = inlined_call_operand.vmem [shape: f32[1,8], index: 4, kind: input, shape index: {}]
  %s5 = inlined_call_operand.vmem [shape: f32[256,8], index: 5, kind: output, shape index: {}]
  %s6 = sld [smem:[#allocation0]]
  $region34: #{tpu_custom_call.1} parent=0
    _
  %s8 = ssub.s32 1, %s6
  %s9 = scalar_select 0, %s8, %s6
  $region1: #{tpu_custom_call.1} parent=0
    #allocation2 [shape = 'u8[131072]{0}', space=vmem, size = 0x20000, scoped, tag = 'input window, operand 0, single buffered']
    #allocation3 [shape = 's32[1]{0}', space=sflag, size = 0x4, scoped, tag = 'scoped memory for tpu_custom_call.1']
    %10 = vsyncpa [#allocation3], 0
    // Predicated region
    $region2: #{tpu_custom_call.1} parent=1 // pred_check
      _
    $region3: #{tpu_custom_call.1} parent=1 // pred_check_branch
      %12 = sbr.rel (0) target = $region5
    $region4: #{tpu_custom_call.1} parent=1 // pred_region
      %s14 = ssub.s32 4096, 4096
      %15 = vsyncadd [#allocation3], %s14
      %s16 = sshll.u32 [#allocation2], 4
      %s17 = int_to_ptr.vmem [resolvable:$true] %s16
      %22 = dma.hbm_to_vmem [thread:$0]  %s0, 4096, %s17, [#allocation3], 128, 128, 8
    $region5: #{tpu_custom_call.1} parent=1 // pred_fallthru
      _
    // Predicated region
    $region6: #{tpu_custom_call.1} parent=1 // pred_check
      _
    $region7: #{tpu_custom_call.1} parent=1 // pred_check_branch
      %24 = sbr.rel (0) target = $region9
    $region8: #{tpu_custom_call.1} parent=1 // pred_region
      _
    $region9: #{tpu_custom_call.1} parent=1 // pred_fallthru
      _
    // Predicated region
    $region10: #{tpu_custom_call.1} parent=1 // pred_check
      _
    $region11: #{tpu_custom_call.1} parent=1 // pred_check_branch
      %26 = sbr.rel (0) target = $region13
    $region12: #{tpu_custom_call.1} parent=1 // pred_region
      _
    $region13: #{tpu_custom_call.1} parent=1 // pred_fallthru
      _
    // Predicated region
    $region14: #{tpu_custom_call.1} parent=1 // pred_check
      _
    $region15: #{tpu_custom_call.1} parent=1 // pred_check_branch
      %28 = sbr.rel (0) target = $region17
    $region16: #{tpu_custom_call.1} parent=1 // pred_region
      _
    $region17: #{tpu_custom_call.1} parent=1 // pred_fallthru
      _
    // Predicated region
    $region18: #{tpu_custom_call.1} parent=1 // pred_check
      _
    $region19: #{tpu_custom_call.1} parent=1 // pred_check_branch
      %30 = sbr.rel (0) target = $region21
    $region20: #{tpu_custom_call.1} parent=1 // pred_region
      _
    $region21: #{tpu_custom_call.1} parent=1 // pred_fallthru
      _
    // Predicated region
    $region22: #{tpu_custom_call.1} parent=1 // pred_check
      _
    $region23: #{tpu_custom_call.1} parent=1 // pred_check_branch
      %32 = sbr.rel (0) target = $region25
    $region24: #{tpu_custom_call.1} parent=1 // pred_region
      %33 = dma.done [#allocation3], 4096
    $region25: #{tpu_custom_call.1} parent=1 // pred_fallthru
      _
    %v35 = vld [vmem:[#allocation2] sm:$0xff]
    %v36 = vld [vmem:[#allocation2 + $0x8] sm:$0xff]
    %v37 = vld [vmem:[#allocation2 + $0x10] sm:$0xff]
    %v38 = vld [vmem:[#allocation2 + $0x18] sm:$0xff]
    %v39 = vld [vmem:[#allocation2 + $0x20] sm:$0xff]
    %v40 = vld [vmem:[#allocation2 + $0x28] sm:$0xff]
    %v41 = vld [vmem:[#allocation2 + $0x30] sm:$0xff]
    %v42 = vld [vmem:[#allocation2 + $0x38] sm:$0xff]
    %v43 = vld [vmem:[#allocation2 + $0x40] sm:$0xff]
    %v44 = vld [vmem:[#allocation2 + $0x48] sm:$0xff]
    %v45 = vld [vmem:[#allocation2 + $0x50] sm:$0xff]
    %v46 = vld [vmem:[#allocation2 + $0x58] sm:$0xff]
    %v47 = vld [vmem:[#allocation2 + $0x60] sm:$0xff]
    %v48 = vld [vmem:[#allocation2 + $0x68] sm:$0xff]
    %v49 = vld [vmem:[#allocation2 + $0x70] sm:$0xff]
    %v50 = vld [vmem:[#allocation2 + $0x78] sm:$0xff]
    %v51 = vld [vmem:[#allocation2 + $0x80] sm:$0xff]
    %v52 = vld [vmem:[#allocation2 + $0x88] sm:$0xff]
    %v53 = vld [vmem:[#allocation2 + $0x90] sm:$0xff]
    %v54 = vld [vmem:[#allocation2 + $0x98] sm:$0xff]
    %v55 = vld [vmem:[#allocation2 + $0xa0] sm:$0xff]
    %v56 = vld [vmem:[#allocation2 + $0xa8] sm:$0xff]
    %v57 = vld [vmem:[#allocation2 + $0xb0] sm:$0xff]
    %v58 = vld [vmem:[#allocation2 + $0xb8] sm:$0xff]
    %v59 = vld [vmem:[#allocation2 + $0xc0] sm:$0xff]
    %v60 = vld [vmem:[#allocation2 + $0xc8] sm:$0xff]
    %v61 = vld [vmem:[#allocation2 + $0xd0] sm:$0xff]
    %v62 = vld [vmem:[#allocation2 + $0xd8] sm:$0xff]
    %v63 = vld [vmem:[#allocation2 + $0xe0] sm:$0xff]
    %v64 = vld [vmem:[#allocation2 + $0xe8] sm:$0xff]
    %v65 = vld [vmem:[#allocation2 + $0xf0] sm:$0xff]
    %v66 = vld [vmem:[#allocation2 + $0xf8] sm:$0xff]
    %v67 = vpack.c.bf16 %v36, %v35
    %v68 = vpack.c.bf16 %v38, %v37
    %v69 = vpack.c.bf16 %v40, %v39
    %v70 = vpack.c.bf16 %v42, %v41
    %v71 = vpack.c.bf16 %v44, %v43
    %v72 = vpack.c.bf16 %v46, %v45
    %v73 = vpack.c.bf16 %v48, %v47
    %v74 = vpack.c.bf16 %v50, %v49
    %v75 = vpack.c.bf16 %v52, %v51
    %v76 = vpack.c.bf16 %v54, %v53
    %v77 = vpack.c.bf16 %v56, %v55
    %v78 = vpack.c.bf16 %v58, %v57
    %v79 = vpack.c.bf16 %v60, %v59
    %v80 = vpack.c.bf16 %v62, %v61
    %v81 = vpack.c.bf16 %v64, %v63
    %v82 = vpack.c.bf16 %v66, %v65
    %v83 = vld [vmem:[%s1] sm:$0xf]
    %v84 = vld [vmem:[%s1 + $0x4] sm:$0xf]
    %v85 = vld [vmem:[%s1 + $0x8] sm:$0xf]
    %v86 = vld [vmem:[%s1 + $0xc] sm:$0xf]
    %v87 = vld [vmem:[%s1 + $0x10] sm:$0xf]
    %v88 = vld [vmem:[%s1 + $0x14] sm:$0xf]
    %v89 = vld [vmem:[%s1 + $0x18] sm:$0xf]
    %v90 = vld [vmem:[%s1 + $0x1c] sm:$0xf]
    %v91 = vld [vmem:[%s1 + $0x20] sm:$0xf]
    %v92 = vld [vmem:[%s1 + $0x24] sm:$0xf]
    %v93 = vld [vmem:[%s1 + $0x28] sm:$0xf]
    %v94 = vld [vmem:[%s1 + $0x2c] sm:$0xf]
    %v95 = vld [vmem:[%s1 + $0x30] sm:$0xf]
    %v96 = vld [vmem:[%s1 + $0x34] sm:$0xf]
    %v97 = vld [vmem:[%s1 + $0x38] sm:$0xf]
    %v98 = vld [vmem:[%s1 + $0x3c] sm:$0xf]
    %v99 = vld [vmem:[%s2] sm:$0x1]
    %v101 = vlaneseq
    %v102 = vshrl.u32 %v101, 7
    %v103 = vsub.s32 0, %v102
    %v104 = vrot.slane %v99, %v103
    %v122 = vunpack.c.l.b16 %v83
    %v123 = vunpack.c.l.b16 %v84
    %v124 = vunpack.c.l.b16 %v85
    %v125 = vunpack.c.l.b16 %v86
    %v126 = vunpack.c.l.b16 %v87
    %v127 = vunpack.c.l.b16 %v88
    %v128 = vunpack.c.l.b16 %v89
    %v129 = vunpack.c.l.b16 %v90
    %v130 = vunpack.c.l.b16 %v91
    %v131 = vunpack.c.l.b16 %v92
    %v132 = vunpack.c.l.b16 %v93
    %v133 = vunpack.c.l.b16 %v94
    %v134 = vunpack.c.l.b16 %v95
    %v135 = vunpack.c.l.b16 %v96
    %v136 = vunpack.c.l.b16 %v97
    %v137 = vunpack.c.l.b16 %v98
    %v138 = vpack.c.b16 %v123, %v122
    %v139 = vpack.c.b16 %v125, %v124
    %v140 = vpack.c.b16 %v127, %v126
    %v141 = vpack.c.b16 %v129, %v128
    %v142 = vpack.c.b16 %v131, %v130
    %v143 = vpack.c.b16 %v133, %v132
    %v144 = vpack.c.b16 %v135, %v134
    %v145 = vpack.c.b16 %v137, %v136
    %154 = vmatprep.subr.bf16.mxu0 0
    %155 = vmatpush1.bf16.msra.mxu0 %v138
    %156 = vmatprep.subr.bf16.mxu0 0
    %157 = vmatpush1.bf16.msra.mxu0 %v139
    %158 = vmatprep.subr.bf16.mxu0 0
    %159 = vmatpush1.bf16.msra.mxu0 %v140
    %160 = vmatprep.subr.bf16.mxu0 0
    %161 = vmatpush1.bf16.msra.mxu0 %v141
    %162 = vmatprep.subr.bf16.mxu0 0
    %163 = vmatpush1.bf16.msra.mxu0 %v142
    %164 = vmatprep.subr.bf16.mxu0 0
    %165 = vmatpush1.bf16.msra.mxu0 %v143
    %166 = vmatprep.subr.bf16.mxu0 0
    %167 = vmatpush1.bf16.msra.mxu0 %v144
    %168 = vmatprep.subr.bf16.mxu0 0
    %169 = vmatpush1.bf16.msra.mxu0 %v145
    %170 = vmatprep.subr.bf16.mxu0 0
    %171 = vmatpush1.bf16.msra.mxu0 0
    %172 = vmatprep.subr.bf16.mxu0 0
    %173 = vmatpush1.bf16.msra.mxu0 0
    %174 = vmatprep.subr.bf16.mxu0 0
    %175 = vmatpush1.bf16.msra.mxu0 0
    %176 = vmatprep.subr.bf16.mxu0 0
    %177 = vmatpush1.bf16.msra.mxu0 0
    %178 = vmatprep.subr.bf16.mxu0 0
    %179 = vmatpush1.bf16.msra.mxu0 0
    %180 = vmatprep.subr.bf16.mxu0 0
    %181 = vmatpush1.bf16.msra.mxu0 0
    %182 = vmatprep.subr.bf16.mxu0 0
    %183 = vmatpush1.bf16.msra.mxu0 0
    %184 = vmatprep.subr.bf16.mxu0 0
    %185 = vmatpush1.bf16.msra.mxu0 0
    %186 = vmatprep.mubr.bf16.mxu0 0
    %187 = vmatmul.mubr.bf16.gmra.mrb[0].mxu0 %v67
    %v188 = vpop.f32.mrb[0].mxu0
    %v189 = vadd.f32 %v104, %v188
    %v190 = vpop.f32.mrb[0].mxu0
    %v191 = vpop.f32.mrb[0].mxu0
    %v192 = vadd.f32 %v104, %v191
    %v193 = vpop.f32.mrb[0].mxu0
    %194 = vmatprep.mubr.bf16.mxu0 0
    %195 = vmatmul.mubr.bf16.gmra.mrb[0].mxu0 %v68
    %v196 = vpop.f32.mrb[0].mxu0
    %v197 = vadd.f32 %v104, %v196
    %v198 = vpop.f32.mrb[0].mxu0
    %v199 = vpop.f32.mrb[0].mxu0
    %v200 = vadd.f32 %v104, %v199
    %v201 = vpop.f32.mrb[0].mxu0
    %202 = vmatprep.mubr.bf16.mxu0 0
    %203 = vmatmul.mubr.bf16.gmra.mrb[0].mxu0 %v69
    %v204 = vpop.f32.mrb[0].mxu0
    %v205 = vadd.f32 %v104, %v204
    %v206 = vpop.f32.mrb[0].mxu0
    %v207 = vpop.f32.mrb[0].mxu0
    %v208 = vadd.f32 %v104, %v207
    %v209 = vpop.f32.mrb[0].mxu0
    %210 = vmatprep.mubr.bf16.mxu0 0
    %211 = vmatmul.mubr.bf16.gmra.mrb[0].mxu0 %v70
    %v212 = vpop.f32.mrb[0].mxu0
    %v213 = vadd.f32 %v104, %v212
    %v214 = vpop.f32.mrb[0].mxu0
    %v215 = vpop.f32.mrb[0].mxu0
    %v216 = vadd.f32 %v104, %v215
    %v217 = vpop.f32.mrb[0].mxu0
    %218 = vmatprep.mubr.bf16.mxu0 0
    %219 = vmatmul.mubr.bf16.gmra.mrb[0].mxu0 %v71
    %v220 = vpop.f32.mrb[0].mxu0
    %v221 = vadd.f32 %v104, %v220
    %v222 = vpop.f32.mrb[0].mxu0
    %v223 = vpop.f32.mrb[0].mxu0
    %v224 = vadd.f32 %v104, %v223
    %v225 = vpop.f32.mrb[0].mxu0
    %226 = vmatprep.mubr.bf16.mxu0 0
    %227 = vmatmul.mubr.bf16.gmra.mrb[0].mxu0 %v72
    %v228 = vpop.f32.mrb[0].mxu0
    %v229 = vadd.f32 %v104, %v228
    %v230 = vpop.f32.mrb[0].mxu0
    %v231 = vpop.f32.mrb[0].mxu0
    %v232 = vadd.f32 %v104, %v231
    %v233 = vpop.f32.mrb[0].mxu0
    %234 = vmatprep.mubr.bf16.mxu0 0
    %235 = vmatmul.mubr.bf16.gmra.mrb[0].mxu0 %v73
    %v236 = vpop.f32.mrb[0].mxu0
    %v237 = vadd.f32 %v104, %v236
    %v238 = vpop.f32.mrb[0].mxu0
    %v239 = vpop.f32.mrb[0].mxu0
    %v240 = vadd.f32 %v104, %v239
    %v241 = vpop.f32.mrb[0].mxu0
    %242 = vmatprep.mubr.bf16.mxu0 0
    %243 = vmatmul.mubr.bf16.gmra.mrb[0].mxu0 %v74
    %v244 = vpop.f32.mrb[0].mxu0
    %v245 = vadd.f32 %v104, %v244
    %v246 = vpop.f32.mrb[0].mxu0
    %v247 = vpop.f32.mrb[0].mxu0
    %v248 = vadd.f32 %v104, %v247
    %v249 = vpop.f32.mrb[0].mxu0
    %250 = vmatprep.mubr.bf16.mxu0 0
    %251 = vmatmul.mubr.bf16.gmra.mrb[0].mxu0 %v75
    %v252 = vpop.f32.mrb[0].mxu0
    %v253 = vadd.f32 %v104, %v252
    %v254 = vpop.f32.mrb[0].mxu0
    %v255 = vpop.f32.mrb[0].mxu0
    %v256 = vadd.f32 %v104, %v255
    %v257 = vpop.f32.mrb[0].mxu0
    %258 = vmatprep.mubr.bf16.mxu0 0
    %259 = vmatmul.mubr.bf16.gmra.mrb[0].mxu0 %v76
    %v260 = vpop.f32.mrb[0].mxu0
    %v261 = vadd.f32 %v104, %v260
    %v262 = vpop.f32.mrb[0].mxu0
    %v263 = vpop.f32.mrb[0].mxu0
    %v264 = vadd.f32 %v104, %v263
    %v265 = vpop.f32.mrb[0].mxu0
    %266 = vmatprep.mubr.bf16.mxu0 0
    %267 = vmatmul.mubr.bf16.gmra.mrb[0].mxu0 %v77
    %v268 = vpop.f32.mrb[0].mxu0
    %v269 = vadd.f32 %v104, %v268
    %v270 = vpop.f32.mrb[0].mxu0
    %v271 = vpop.f32.mrb[0].mxu0
    %v272 = vadd.f32 %v104, %v271
    %v273 = vpop.f32.mrb[0].mxu0
    %274 = vmatprep.mubr.bf16.mxu0 0
    %275 = vmatmul.mubr.bf16.gmra.mrb[0].mxu0 %v78
    %v276 = vpop.f32.mrb[0].mxu0
    %v277 = vadd.f32 %v104, %v276
    %v278 = vpop.f32.mrb[0].mxu0
    %v279 = vpop.f32.mrb[0].mxu0
    %v280 = vadd.f32 %v104, %v279
    %v281 = vpop.f32.mrb[0].mxu0
    %282 = vmatprep.mubr.bf16.mxu0 0
    %283 = vmatmul.mubr.bf16.gmra.mrb[0].mxu0 %v79
    %v284 = vpop.f32.mrb[0].mxu0
    %v285 = vadd.f32 %v104, %v284
    %v286 = vpop.f32.mrb[0].mxu0
    %v287 = vpop.f32.mrb[0].mxu0
    %v288 = vadd.f32 %v104, %v287
    %v289 = vpop.f32.mrb[0].mxu0
    %290 = vmatprep.mubr.bf16.mxu0 0
    %291 = vmatmul.mubr.bf16.gmra.mrb[0].mxu0 %v80
    %v292 = vpop.f32.mrb[0].mxu0
    %v293 = vadd.f32 %v104, %v292
    %v294 = vpop.f32.mrb[0].mxu0
    %v295 = vpop.f32.mrb[0].mxu0
    %v296 = vadd.f32 %v104, %v295
    %v297 = vpop.f32.mrb[0].mxu0
    %298 = vmatprep.mubr.bf16.mxu0 0
    %299 = vmatmul.mubr.bf16.gmra.mrb[0].mxu0 %v81
    %v300 = vpop.f32.mrb[0].mxu0
    %v301 = vadd.f32 %v104, %v300
    %v302 = vpop.f32.mrb[0].mxu0
    %v303 = vpop.f32.mrb[0].mxu0
    %v304 = vadd.f32 %v104, %v303
    %v305 = vpop.f32.mrb[0].mxu0
    %306 = vmatprep.mubr.bf16.mxu0 0
    %307 = vmatmul.mubr.bf16.gmra.mrb[0].mxu0 %v82
    %v308 = vpop.f32.mrb[0].mxu0
    %v309 = vadd.f32 %v104, %v308
    %v310 = vpop.f32.mrb[0].mxu0
    %v311 = vpop.f32.mrb[0].mxu0
    %v312 = vadd.f32 %v104, %v311
    %v313 = vpop.f32.mrb[0].mxu0
    %314 = vdwg.mxu0
    %v315 = vmax.f32 %v189, 0.0
    %v316 = vmax.f32 %v192, 0.0
    %v317 = vmax.f32 %v197, 0.0
    %v318 = vmax.f32 %v200, 0.0
    %v319 = vmax.f32 %v205, 0.0
    %v320 = vmax.f32 %v208, 0.0
    %v321 = vmax.f32 %v213, 0.0
    %v322 = vmax.f32 %v216, 0.0
    %v323 = vmax.f32 %v221, 0.0
    %v324 = vmax.f32 %v224, 0.0
    %v325 = vmax.f32 %v229, 0.0
    %v326 = vmax.f32 %v232, 0.0
    %v327 = vmax.f32 %v237, 0.0
    %v328 = vmax.f32 %v240, 0.0
    %v329 = vmax.f32 %v245, 0.0
    %v330 = vmax.f32 %v248, 0.0
    %v331 = vmax.f32 %v253, 0.0
    %v332 = vmax.f32 %v256, 0.0
    %v333 = vmax.f32 %v261, 0.0
    %v334 = vmax.f32 %v264, 0.0
    %v335 = vmax.f32 %v269, 0.0
    %v336 = vmax.f32 %v272, 0.0
    %v337 = vmax.f32 %v277, 0.0
    %v338 = vmax.f32 %v280, 0.0
    %v339 = vmax.f32 %v285, 0.0
    %v340 = vmax.f32 %v288, 0.0
    %v341 = vmax.f32 %v293, 0.0
    %v342 = vmax.f32 %v296, 0.0
    %v343 = vmax.f32 %v301, 0.0
    %v344 = vmax.f32 %v304, 0.0
    %v345 = vmax.f32 %v309, 0.0
    %v346 = vmax.f32 %v312, 0.0
    %v347 = vpack.c.bf16 %v316, %v315
    %v348 = vpack.c.bf16 %v318, %v317
    %v349 = vpack.c.bf16 %v320, %v319
    %v350 = vpack.c.bf16 %v322, %v321
    %v351 = vpack.c.bf16 %v324, %v323
    %v352 = vpack.c.bf16 %v326, %v325
    %v353 = vpack.c.bf16 %v328, %v327
    %v354 = vpack.c.bf16 %v330, %v329
    %v355 = vpack.c.bf16 %v332, %v331
    %v356 = vpack.c.bf16 %v334, %v333
    %v357 = vpack.c.bf16 %v336, %v335
    %v358 = vpack.c.bf16 %v338, %v337
    %v359 = vpack.c.bf16 %v340, %v339
    %v360 = vpack.c.bf16 %v342, %v341
    %v361 = vpack.c.bf16 %v344, %v343
    %v362 = vpack.c.bf16 %v346, %v345
    %v363 = vld [vmem:[%s3] sm:$0xf]
    %v364 = vld [vmem:[%s3 + $0x4] sm:$0xf]
    %v365 = vld [vmem:[%s3 + $0x8] sm:$0xf]
    %v366 = vld [vmem:[%s3 + $0xc] sm:$0xf]
    %v367 = vld [vmem:[%s3 + $0x10] sm:$0xf]
    %v368 = vld [vmem:[%s3 + $0x14] sm:$0xf]
    %v369 = vld [vmem:[%s3 + $0x18] sm:$0xf]
    %v370 = vld [vmem:[%s3 + $0x1c] sm:$0xf]
    %v371 = vld [vmem:[%s3 + $0x20] sm:$0xf]
    %v372 = vld [vmem:[%s3 + $0x24] sm:$0xf]
    %v373 = vld [vmem:[%s3 + $0x28] sm:$0xf]
    %v374 = vld [vmem:[%s3 + $0x2c] sm:$0xf]
    %v375 = vld [vmem:[%s3 + $0x30] sm:$0xf]
    %v376 = vld [vmem:[%s3 + $0x34] sm:$0xf]
    %v377 = vld [vmem:[%s3 + $0x38] sm:$0xf]
    %v378 = vld [vmem:[%s3 + $0x3c] sm:$0xf]
    %v379 = vld [vmem:[%s4] sm:$0x1]
    %v381 = vlaneseq
    %v382 = vshrl.u32 %v381, 7
    %v383 = vsub.s32 0, %v382
    %v384 = vrot.slane %v379, %v383
    %v402 = vunpack.c.l.b16 %v363
    %v403 = vunpack.c.l.b16 %v364
    %v404 = vunpack.c.l.b16 %v365
    %v405 = vunpack.c.l.b16 %v366
    %v406 = vunpack.c.l.b16 %v367
    %v407 = vunpack.c.l.b16 %v368
    %v408 = vunpack.c.l.b16 %v369
    %v409 = vunpack.c.l.b16 %v370
    %v410 = vunpack.c.l.b16 %v371
    %v411 = vunpack.c.l.b16 %v372
    %v412 = vunpack.c.l.b16 %v373
    %v413 = vunpack.c.l.b16 %v374
    %v414 = vunpack.c.l.b16 %v375
    %v415 = vunpack.c.l.b16 %v376
    %v416 = vunpack.c.l.b16 %v377
    %v417 = vunpack.c.l.b16 %v378
    %v418 = vpack.c.b16 %v403, %v402
    %v419 = vpack.c.b16 %v405, %v404
    %v420 = vpack.c.b16 %v407, %v406
    %v421 = vpack.c.b16 %v409, %v408
    %v422 = vpack.c.b16 %v411, %v410
    %v423 = vpack.c.b16 %v413, %v412
    %v424 = vpack.c.b16 %v415, %v414
    %v425 = vpack.c.b16 %v417, %v416
    %434 = vmatprep.subr.bf16.mxu0 0
    %435 = vmatpush1.bf16.msra.mxu0 %v418
    %436 = vmatprep.subr.bf16.mxu0 0
    %437 = vmatpush1.bf16.msra.mxu0 %v419
    %438 = vmatprep.subr.bf16.mxu0 0
    %439 = vmatpush1.bf16.msra.mxu0 %v420
    %440 = vmatprep.subr.bf16.mxu0 0
    %441 = vmatpush1.bf16.msra.mxu0 %v421
    %442 = vmatprep.subr.bf16.mxu0 0
    %443 = vmatpush1.bf16.msra.mxu0 %v422
    %444 = vmatprep.subr.bf16.mxu0 0
    %445 = vmatpush1.bf16.msra.mxu0 %v423
    %446 = vmatprep.subr.bf16.mxu0 0
    %447 = vmatpush1.bf16.msra.mxu0 %v424
    %448 = vmatprep.subr.bf16.mxu0 0
    %449 = vmatpush1.bf16.msra.mxu0 %v425
    %450 = vmatprep.subr.bf16.mxu0 0
    %451 = vmatpush1.bf16.msra.mxu0 0
    %452 = vmatprep.subr.bf16.mxu0 0
    %453 = vmatpush1.bf16.msra.mxu0 0
    %454 = vmatprep.subr.bf16.mxu0 0
    %455 = vmatpush1.bf16.msra.mxu0 0
    %456 = vmatprep.subr.bf16.mxu0 0
    %457 = vmatpush1.bf16.msra.mxu0 0
    %458 = vmatprep.subr.bf16.mxu0 0
    %459 = vmatpush1.bf16.msra.mxu0 0
    %460 = vmatprep.subr.bf16.mxu0 0
    %461 = vmatpush1.bf16.msra.mxu0 0
    %462 = vmatprep.subr.bf16.mxu0 0
    %463 = vmatpush1.bf16.msra.mxu0 0
    %464 = vmatprep.subr.bf16.mxu0 0
    %465 = vmatpush1.bf16.msra.mxu0 0
    %466 = vmatprep.mubr.bf16.mxu0 0
    %467 = vmatmul.mubr.bf16.gmra.mrb[0].mxu0 %v347
    %v468 = vpop.f32.mrb[0].mxu0
    %v469 = vadd.f32 %v384, %v468
    %v470 = vpop.f32.mrb[0].mxu0
    %v471 = vpop.f32.mrb[0].mxu0
    %v472 = vadd.f32 %v384, %v471
    %v473 = vpop.f32.mrb[0].mxu0
    %474 = vmatprep.mubr.bf16.mxu0 0
    %475 = vmatmul.mubr.bf16.gmra.mrb[0].mxu0 %v348
    %v476 = vpop.f32.mrb[0].mxu0
    %v477 = vadd.f32 %v384, %v476
    %v478 = vpop.f32.mrb[0].mxu0
    %v479 = vpop.f32.mrb[0].mxu0
    %v480 = vadd.f32 %v384, %v479
    %v481 = vpop.f32.mrb[0].mxu0
    %482 = vmatprep.mubr.bf16.mxu0 0
    %483 = vmatmul.mubr.bf16.gmra.mrb[0].mxu0 %v349
    %v484 = vpop.f32.mrb[0].mxu0
    %v485 = vadd.f32 %v384, %v484
    %v486 = vpop.f32.mrb[0].mxu0
    %v487 = vpop.f32.mrb[0].mxu0
    %v488 = vadd.f32 %v384, %v487
    %v489 = vpop.f32.mrb[0].mxu0
    %490 = vmatprep.mubr.bf16.mxu0 0
    %491 = vmatmul.mubr.bf16.gmra.mrb[0].mxu0 %v350
    %v492 = vpop.f32.mrb[0].mxu0
    %v493 = vadd.f32 %v384, %v492
    %v494 = vpop.f32.mrb[0].mxu0
    %v495 = vpop.f32.mrb[0].mxu0
    %v496 = vadd.f32 %v384, %v495
    %v497 = vpop.f32.mrb[0].mxu0
    %498 = vmatprep.mubr.bf16.mxu0 0
    %499 = vmatmul.mubr.bf16.gmra.mrb[0].mxu0 %v351
    %v500 = vpop.f32.mrb[0].mxu0
    %v501 = vadd.f32 %v384, %v500
    %v502 = vpop.f32.mrb[0].mxu0
    %v503 = vpop.f32.mrb[0].mxu0
    %v504 = vadd.f32 %v384, %v503
    %v505 = vpop.f32.mrb[0].mxu0
    %506 = vmatprep.mubr.bf16.mxu0 0
    %507 = vmatmul.mubr.bf16.gmra.mrb[0].mxu0 %v352
    %v508 = vpop.f32.mrb[0].mxu0
    %v509 = vadd.f32 %v384, %v508
    %v510 = vpop.f32.mrb[0].mxu0
    %v511 = vpop.f32.mrb[0].mxu0
    %v512 = vadd.f32 %v384, %v511
    %v513 = vpop.f32.mrb[0].mxu0
    %514 = vmatprep.mubr.bf16.mxu0 0
    %515 = vmatmul.mubr.bf16.gmra.mrb[0].mxu0 %v353
    %v516 = vpop.f32.mrb[0].mxu0
    %v517 = vadd.f32 %v384, %v516
    %v518 = vpop.f32.mrb[0].mxu0
    %v519 = vpop.f32.mrb[0].mxu0
    %v520 = vadd.f32 %v384, %v519
    %v521 = vpop.f32.mrb[0].mxu0
    %522 = vmatprep.mubr.bf16.mxu0 0
    %523 = vmatmul.mubr.bf16.gmra.mrb[0].mxu0 %v354
    %v524 = vpop.f32.mrb[0].mxu0
    %v525 = vadd.f32 %v384, %v524
    %v526 = vpop.f32.mrb[0].mxu0
    %v527 = vpop.f32.mrb[0].mxu0
    %v528 = vadd.f32 %v384, %v527
    %v529 = vpop.f32.mrb[0].mxu0
    %530 = vmatprep.mubr.bf16.mxu0 0
    %531 = vmatmul.mubr.bf16.gmra.mrb[0].mxu0 %v355
    %v532 = vpop.f32.mrb[0].mxu0
    %v533 = vadd.f32 %v384, %v532
    %v534 = vpop.f32.mrb[0].mxu0
    %v535 = vpop.f32.mrb[0].mxu0
    %v536 = vadd.f32 %v384, %v535
    %v537 = vpop.f32.mrb[0].mxu0
    %538 = vmatprep.mubr.bf16.mxu0 0
    %539 = vmatmul.mubr.bf16.gmra.mrb[0].mxu0 %v356
    %v540 = vpop.f32.mrb[0].mxu0
    %v541 = vadd.f32 %v384, %v540
    %v542 = vpop.f32.mrb[0].mxu0
    %v543 = vpop.f32.mrb[0].mxu0
    %v544 = vadd.f32 %v384, %v543
    %v545 = vpop.f32.mrb[0].mxu0
    %546 = vmatprep.mubr.bf16.mxu0 0
    %547 = vmatmul.mubr.bf16.gmra.mrb[0].mxu0 %v357
    %v548 = vpop.f32.mrb[0].mxu0
    %v549 = vadd.f32 %v384, %v548
    %v550 = vpop.f32.mrb[0].mxu0
    %v551 = vpop.f32.mrb[0].mxu0
    %v552 = vadd.f32 %v384, %v551
    %v553 = vpop.f32.mrb[0].mxu0
    %554 = vmatprep.mubr.bf16.mxu0 0
    %555 = vmatmul.mubr.bf16.gmra.mrb[0].mxu0 %v358
    %v556 = vpop.f32.mrb[0].mxu0
    %v557 = vadd.f32 %v384, %v556
    %v558 = vpop.f32.mrb[0].mxu0
    %v559 = vpop.f32.mrb[0].mxu0
    %v560 = vadd.f32 %v384, %v559
    %v561 = vpop.f32.mrb[0].mxu0
    %562 = vmatprep.mubr.bf16.mxu0 0
    %563 = vmatmul.mubr.bf16.gmra.mrb[0].mxu0 %v359
    %v564 = vpop.f32.mrb[0].mxu0
    %v565 = vadd.f32 %v384, %v564
    %v566 = vpop.f32.mrb[0].mxu0
    %v567 = vpop.f32.mrb[0].mxu0
    %v568 = vadd.f32 %v384, %v567
    %v569 = vpop.f32.mrb[0].mxu0
    %570 = vmatprep.mubr.bf16.mxu0 0
    %571 = vmatmul.mubr.bf16.gmra.mrb[0].mxu0 %v360
    %v572 = vpop.f32.mrb[0].mxu0
    %v573 = vadd.f32 %v384, %v572
    %v574 = vpop.f32.mrb[0].mxu0
    %v575 = vpop.f32.mrb[0].mxu0
    %v576 = vadd.f32 %v384, %v575
    %v577 = vpop.f32.mrb[0].mxu0
    %578 = vmatprep.mubr.bf16.mxu0 0
    %579 = vmatmul.mubr.bf16.gmra.mrb[0].mxu0 %v361
    %v580 = vpop.f32.mrb[0].mxu0
    %v581 = vadd.f32 %v384, %v580
    %v582 = vpop.f32.mrb[0].mxu0
    %v583 = vpop.f32.mrb[0].mxu0
    %v584 = vadd.f32 %v384, %v583
    %v585 = vpop.f32.mrb[0].mxu0
    %586 = vmatprep.mubr.bf16.mxu0 0
    %587 = vmatmul.mubr.bf16.gmra.mrb[0].mxu0 %v362
    %v588 = vpop.f32.mrb[0].mxu0
    %v589 = vadd.f32 %v384, %v588
    %v590 = vpop.f32.mrb[0].mxu0
    %v591 = vpop.f32.mrb[0].mxu0
    %v592 = vadd.f32 %v384, %v591
    %v593 = vpop.f32.mrb[0].mxu0
    %594 = vdwg.mxu0
    %vm595 = vcmask 64512
    %596 = vst.msk [vmem:[%s5] sm:$0xff] %vm595, %v469
    %597 = vst.msk [vmem:[%s5 + $0x8] sm:$0xff] %vm595, %v472
    %598 = vst.msk [vmem:[%s5 + $0x10] sm:$0xff] %vm595, %v477
    %599 = vst.msk [vmem:[%s5 + $0x18] sm:$0xff] %vm595, %v480
    %600 = vst.msk [vmem:[%s5 + $0x20] sm:$0xff] %vm595, %v485
    %601 = vst.msk [vmem:[%s5 + $0x28] sm:$0xff] %vm595, %v488
    %602 = vst.msk [vmem:[%s5 + $0x30] sm:$0xff] %vm595, %v493
    %603 = vst.msk [vmem:[%s5 + $0x38] sm:$0xff] %vm595, %v496
    %604 = vst.msk [vmem:[%s5 + $0x40] sm:$0xff] %vm595, %v501
    %605 = vst.msk [vmem:[%s5 + $0x48] sm:$0xff] %vm595, %v504
    %606 = vst.msk [vmem:[%s5 + $0x50] sm:$0xff] %vm595, %v509
    %607 = vst.msk [vmem:[%s5 + $0x58] sm:$0xff] %vm595, %v512
    %608 = vst.msk [vmem:[%s5 + $0x60] sm:$0xff] %vm595, %v517
    %609 = vst.msk [vmem:[%s5 + $0x68] sm:$0xff] %vm595, %v520
    %610 = vst.msk [vmem:[%s5 + $0x70] sm:$0xff] %vm595, %v525
    %611 = vst.msk [vmem:[%s5 + $0x78] sm:$0xff] %vm595, %v528
    %612 = vst.msk [vmem:[%s5 + $0x80] sm:$0xff] %vm595, %v533
    %613 = vst.msk [vmem:[%s5 + $0x88] sm:$0xff] %vm595, %v536
    %614 = vst.msk [vmem:[%s5 + $0x90] sm:$0xff] %vm595, %v541
    %615 = vst.msk [vmem:[%s5 + $0x98] sm:$0xff] %vm595, %v544
    %616 = vst.msk [vmem:[%s5 + $0xa0] sm:$0xff] %vm595, %v549
    %617 = vst.msk [vmem:[%s5 + $0xa8] sm:$0xff] %vm595, %v552
    %618 = vst.msk [vmem:[%s5 + $0xb0] sm:$0xff] %vm595, %v557
    %619 = vst.msk [vmem:[%s5 + $0xb8] sm:$0xff] %vm595, %v560
    %620 = vst.msk [vmem:[%s5 + $0xc0] sm:$0xff] %vm595, %v565
    %621 = vst.msk [vmem:[%s5 + $0xc8] sm:$0xff] %vm595, %v568
    %622 = vst.msk [vmem:[%s5 + $0xd0] sm:$0xff] %vm595, %v573
    %623 = vst.msk [vmem:[%s5 + $0xd8] sm:$0xff] %vm595, %v576
    %624 = vst.msk [vmem:[%s5 + $0xe0] sm:$0xff] %vm595, %v581
    %625 = vst.msk [vmem:[%s5 + $0xe8] sm:$0xff] %vm595, %v584
    %626 = vst.msk [vmem:[%s5 + $0xf0] sm:$0xff] %vm595, %v589
    %627 = vst.msk [vmem:[%s5 + $0xf8] sm:$0xff] %vm595, %v592
    // Predicated region
    $region26: #{tpu_custom_call.1} parent=1 // pred_check
      _
    $region27: #{tpu_custom_call.1} parent=1 // pred_check_branch
      %629 = sbr.rel (0) target = $region29
    $region28: #{tpu_custom_call.1} parent=1 // pred_region
      _
    $region29: #{tpu_custom_call.1} parent=1 // pred_fallthru
      _
    // Predicated region
    $region30: #{tpu_custom_call.1} parent=1 // pred_check
      _
    $region31: #{tpu_custom_call.1} parent=1 // pred_check_branch
      %631 = sbr.rel (0) target = $region33
    $region32: #{tpu_custom_call.1} parent=1 // pred_region
      _
    $region33: #{tpu_custom_call.1} parent=1 // pred_fallthru
      _
    %632 = vsyncpa [#allocation3], 1

</llo_original>
